<compile_context>
chip_gen: v6e
topology: v6e:2x2x1
jax: 0.10.0
libtpu: 0.0.40
codegen_flags: <defaults>
</compile_context>

<pallas_src>
import jax
import jax.numpy as jnp
from jax.experimental import pallas as pl
from jax.experimental.pallas import tpu as pltpu

EPS = 1e-5

_TILE_CANDIDATES = (512, 256, 128, 64, 32, 16, 8)


def _pick_tile(m, cap=512):
    """Largest row tile <= cap that exactly divides m."""
    for t in _TILE_CANDIDATES:
        if t <= cap and m % t == 0:
            return t
    # TODO(synk): pad ragged row counts to a multiple of 8 instead of falling
    # back to a single full-size block.
    return m


# ---------------------------------------------------------------------------
# passes 1 & 3: (optional fused BN+ReLU) -> 1x1 conv (+ optional projection
# shortcut) -> fused per-channel batch stats.
# ---------------------------------------------------------------------------

def _make_pointwise_kernel(pre_bn_relu, with_proj):
    def kernel(*refs):
        it = iter(refs)
        x_ref = next(it)
        sc_ref = next(it) if pre_bn_relu else None
        sh_ref = next(it) if pre_bn_relu else None
        w_ref = next(it)
        wp_ref = next(it) if with_proj else None
        bp_ref = next(it) if with_proj else None
        y_ref = next(it)
        p_ref = next(it) if with_proj else None
        s_ref = next(it)
        q_ref = next(it)

        # stats accumulate across the (arbitrary) M grid axis
        @pl.when(pl.program_id(0) == 0)
        def _():
            s_ref[...] = jnp.zeros_like(s_ref)
            q_ref[...] = jnp.zeros_like(q_ref)

        x = x_ref[...]
        if pre_bn_relu:
            # previous layer's BatchNorm (precomputed scale/shift) + ReLU
            x = jnp.maximum(x * sc_ref[...] + sh_ref[...], 0.0)
        xb = x.astype(w_ref.dtype)                       # bf16 into the MXU
        y = jnp.dot(xb, w_ref[...], preferred_element_type=jnp.float32)
        y_ref[...] = y
        if with_proj:
            p_ref[...] = (
                jnp.dot(xb, wp_ref[...], preferred_element_type=jnp.float32)
                + bp_ref[...])
        s_ref[...] += jnp.sum(y, axis=0, keepdims=True)
        q_ref[...] += jnp.sum(y * y, axis=0, keepdims=True)
    return kernel


def _pointwise_conv(x_flat, w, *, scale=None, shift=None,
                    w_proj=None, b_proj=None):
    """y = (relu(x*scale+shift) if scale else x) @ w, plus optional projection
    shortcut p = x @ w_proj + b_proj, plus fused BN stats (sum, sum-of-squares
    of y).  x_flat: [M, K]; w: [K, Cout] (bf16)."""
    M, K = x_flat.shape
    cout = w.shape[1]
    tm = _pick_tile(M)
    pre = scale is not None
    proj = w_proj is not None

    in_specs = [pl.BlockSpec((tm, K), lambda i: (i, 0))]
    args = [x_flat]
    if pre:
        in_specs += [pl.BlockSpec((1, K), lambda i: (0, 0)),
                     pl.BlockSpec((1, K), lambda i: (0, 0))]
        args += [scale, shift]
    in_specs.append(pl.BlockSpec((K, cout), lambda i: (0, 0)))
    args.append(w)
    if proj:
        cp = w_proj.shape[1]
        in_specs += [pl.BlockSpec((K, cp), lambda i: (0, 0)),
                     pl.BlockSpec((1, cp), lambda i: (0, 0))]
        args += [w_proj, b_proj]

    out_shape = [jax.ShapeDtypeStruct((M, cout), jnp.float32)]
    out_specs = [pl.BlockSpec((tm, cout), lambda i: (i, 0))]
    if proj:
        out_shape.append(jax.ShapeDtypeStruct((M, cp), jnp.float32))
        out_specs.append(pl.BlockSpec((tm, cp), lambda i: (i, 0)))
    out_shape += [jax.ShapeDtypeStruct((1, cout), jnp.float32),
                  jax.ShapeDtypeStruct((1, cout), jnp.float32)]
    out_specs += [pl.BlockSpec((1, cout), lambda i: (0, 0)),
                  pl.BlockSpec((1, cout), lambda i: (0, 0))]

    # TODO(synk): for real ResNet widths (K, Cout up to ~4.6K/512), add a K
    # grid axis with an f32 VMEM accumulator and tile Cout to 128-256 lanes.
    # TODO(synk): on v7x, emit per-core partial stats (leading parallel axis)
    # so both TensorCores share the reduction.
    res = pl.pallas_call(
        _make_pointwise_kernel(pre, proj),
        out_shape=tuple(out_shape),
        grid=(M // tm,),
        in_specs=in_specs,
        out_specs=tuple(out_specs),
        compiler_params=pltpu.CompilerParams(
            dimension_semantics=("arbitrary",)),
    )(*args)
    if proj:
        y, p, s, q = res
        return y, p, s, q
    y, s, q = res
    return y, None, s, q


# ---------------------------------------------------------------------------
# pass 2: BN1-apply + ReLU + 3x3 "same" conv (in-kernel implicit im2col) + stats.
# ---------------------------------------------------------------------------

def _make_conv3x3_kernel(Ho, Wo, mid, guard):
    HoWo = Ho * Wo

    def kernel(y1_ref, sc_ref, sh_ref, w_ref, y2_ref, s_ref, q_ref, pad_ref):
        @pl.when(pl.program_id(0) == 0)
        def _():
            s_ref[...] = jnp.zeros_like(s_ref)
            q_ref[...] = jnp.zeros_like(q_ref)
            # halo guard rows only need zeroing once: the scratch persists
            # across grid steps and the body never writes into the guards.
            pad_ref[:guard, :] = jnp.zeros((guard, mid), jnp.float32)
            pad_ref[guard + HoWo:, :] = jnp.zeros((guard, mid), jnp.float32)

        # fused BN1 (precomputed scale/shift) + ReLU, staged in VMEM.
        a1 = jnp.maximum(y1_ref[...] * sc_ref[...] + sh_ref[...], 0.0)
        pad_ref[guard:guard + HoWo, :] = a1

        # implicit im2col: the zero-padded 3x3 conv is a sum of 9 per-tap
        # matmuls against constant-shift views of the row-flattened,
        # zero-guarded image; left/right border wrap-around is fixed with a
        # per-row column mask.  No lane-axis concatenate needed.
        col = jax.lax.broadcasted_iota(jnp.int32, (HoWo, 1), 0) % Wo
        cout = s_ref.shape[-1]
        y2 = jnp.zeros((HoWo, cout), jnp.float32)
        for dy in range(3):
            for dx in range(3):
                shift = (dy - 1) * Wo + (dx - 1)
                sl = pad_ref[guard + shift:guard + shift + HoWo, :]
                if dx == 0:
                    sl = jnp.where(col > 0, sl, 0.0)
                elif dx == 2:
                    sl = jnp.where(col < Wo - 1, sl, 0.0)
                w_tap = w_ref[dy * 3 + dx]                 # (mid, cout) bf16
                y2 = y2 + jnp.dot(sl.astype(w_ref.dtype), w_tap,
                                  preferred_element_type=jnp.float32)

        y2_ref[...] = y2
        s_ref[...] += jnp.sum(y2, axis=0, keepdims=True)
        q_ref[...] += jnp.sum(y2 * y2, axis=0, keepdims=True)

    return kernel


def _conv3x3(y1_flat, scale, shift, w2taps, N, Ho, Wo, mid):
    """relu(bn1(y1)) -> 3x3 'same' conv, one image per grid step, plus stats."""
    HoWo = Ho * Wo
    M = N * HoWo
    guard = ((Wo + 1 + 7) // 8) * 8          # sublane-aligned halo guard
    cout = w2taps.shape[-1]
    # TODO(synk): for large images, tile over row bands (manual halo DMA)
    # instead of holding one whole image per grid step in VMEM.
    return pl.pallas_call(
        _make_conv3x3_kernel(Ho, Wo, mid, guard),
        out_shape=(jax.ShapeDtypeStruct((M, cout), jnp.float32),
                   jax.ShapeDtypeStruct((1, cout), jnp.float32),
                   jax.ShapeDtypeStruct((1, cout), jnp.float32)),
        grid=(N,),
        in_specs=[pl.BlockSpec((HoWo, mid), lambda n: (n, 0)),
                  pl.BlockSpec((1, mid), lambda n: (0, 0)),
                  pl.BlockSpec((1, mid), lambda n: (0, 0)),
                  pl.BlockSpec((9, mid, cout), lambda n: (0, 0, 0))],
        out_specs=(pl.BlockSpec((HoWo, cout), lambda n: (n, 0)),
                   pl.BlockSpec((1, cout), lambda n: (0, 0)),
                   pl.BlockSpec((1, cout), lambda n: (0, 0))),
        scratch_shapes=[pltpu.VMEM((HoWo + 2 * guard, mid), jnp.float32)],
        compiler_params=pltpu.CompilerParams(
            dimension_semantics=("arbitrary",)),
    )(y1_flat, scale, shift, w2taps)


# ---------------------------------------------------------------------------
# pass 4: BN3-apply + residual add + ReLU, lane-dense.
# ---------------------------------------------------------------------------

def _bn_add_relu_kernel(y_ref, r_ref, sc_ref, sh_ref, o_ref):
    o_ref[...] = jnp.maximum(
        y_ref[...] * sc_ref[...] + sh_ref[...] + r_ref[...], 0.0)


def _bn_add_relu(y, resid, scale, shift):
    """out = relu(bn3(y) + resid), channel axis repacked to 128 lanes."""
    M, C = y.shape
    if C <= 128 and 128 % C == 0 and M % (128 // C) == 0:
        f = 128 // C                          # spatial rows folded per lane row
        yv, rv = y.reshape(M // f, 128), resid.reshape(M // f, 128)
        sv, hv = jnp.tile(scale, (1, f)), jnp.tile(shift, (1, f))
    else:
        yv, rv, sv, hv = y, resid, scale, shift
    Mr, L = yv.shape
    tm = _pick_tile(Mr)
    out = pl.pallas_call(
        _bn_add_relu_kernel,
        out_shape=jax.ShapeDtypeStruct((Mr, L), jnp.float32),
        grid=(Mr // tm,),
        in_specs=[pl.BlockSpec((tm, L), lambda i: (i, 0)),
                  pl.BlockSpec((tm, L), lambda i: (i, 0)),
                  pl.BlockSpec((1, L), lambda i: (0, 0)),
                  pl.BlockSpec((1, L), lambda i: (0, 0))],
        out_specs=pl.BlockSpec((tm, L), lambda i: (i, 0)),
        compiler_params=pltpu.CompilerParams(
            dimension_semantics=("parallel",)),
    )(yv, rv, sv, hv)
    return out.reshape(M, C)


# ---------------------------------------------------------------------------
# glue
# ---------------------------------------------------------------------------

def _bn_scale_shift(s, q, gamma, beta, count):
    """Training-mode BatchNorm scale/shift from fused batch sums ((1, C) math)."""
    mean = s / count
    var = q / count - mean * mean                # biased variance
    # TODO(synk): switch to a shifted-mean accumulation if f32 single-pass
    # variance ever becomes a precision issue at very large M.
    scale = gamma.reshape(1, -1) * jax.lax.rsqrt(var + EPS)
    shift = beta.reshape(1, -1) - mean * scale
    return scale, shift


def improved_residual_forward_nhwc(x, params, *, use_1x1conv, stride):
    """ImprovedResidual forward on NHWC activations (all hot work in Pallas)."""
    N, H, W, cin = x.shape
    mid = params["w1"].shape[0]
    cout = params["w3"].shape[0]

    # conv1/conv4 are 1x1 with stride s == spatial subsample + dense 1x1 conv.
    xs = x[:, ::stride, ::stride, :]
    _, Ho, Wo, _ = xs.shape
    M = N * Ho * Wo
    xs_flat = xs.reshape(M, cin)
    xs_bf = xs_flat.astype(jnp.bfloat16)

    # weights as matmul operands (bf16 into the MXU).  conv1/conv2/conv3
    # biases are dropped: training-mode BN cancels them exactly.
    w1 = jnp.transpose(params["w1"].reshape(mid, cin)).astype(jnp.bfloat16)
    w2 = jnp.transpose(params["w2"], (2, 3, 1, 0)).reshape(9, mid, mid)
    w2 = w2.astype(jnp.bfloat16)                         # (tap, cin, cout)
    w3 = jnp.transpose(params["w3"].reshape(cout, mid)).astype(jnp.bfloat16)
    if use_1x1conv:
        w4 = jnp.transpose(params["w4"].reshape(cout, cin)).astype(jnp.bfloat16)
        b4 = params["b4"].reshape(1, cout).astype(jnp.float32)
    else:
        if cin != cout or stride != 1:
            raise ValueError("identity shortcut requires in_channels == "
                             "out_channels and stride == 1")
        w4 = b4 = None

    # pass 1: conv1 + projection shortcut + BN1 batch stats
    y1, shortcut, s1, q1 = _pointwise_conv(xs_bf, w1, w_proj=w4, b_proj=b4)
    if shortcut is None:
        shortcut = xs_flat                              # identity shortcut (f32)
    scale1, shift1 = _bn_scale_shift(s1, q1, params["g1"], params["be1"], M)

    # pass 2: BN1 + ReLU fused into conv2 (3x3) + BN2 batch stats
    y2, s2, q2 = _conv3x3(y1, scale1, shift1, w2, N, Ho, Wo, mid)
    scale2, shift2 = _bn_scale_shift(s2, q2, params["g2"], params["be2"], M)

    # pass 3: BN2 + ReLU fused into conv3 (1x1) + BN3 batch stats
    y3, _, s3, q3 = _pointwise_conv(y2, w3, scale=scale2, shift=shift2)
    scale3, shift3 = _bn_scale_shift(s3, q3, params["g3"], params["be3"], M)

    # pass 4: BN3 + residual add + ReLU (lane-dense)
    out_flat = _bn_add_relu(y3, shortcut, scale3, shift3)
    return out_flat.reshape(N, Ho, Wo, cout)


def improved_residual_forward(x_nchw, params, *, use_1x1conv, stride):
    """PyTorch-interface wrapper (NCHW in / NCHW out)."""
    x = jnp.transpose(x_nchw, (0, 2, 3, 1)).astype(jnp.float32)
    out = improved_residual_forward_nhwc(
        x, params, use_1x1conv=use_1x1conv, stride=stride)
    return jnp.transpose(out, (0, 3, 1, 2))


# ---------------------------------------------------------------------------
# pure-JAX reference
# ---------------------------------------------------------------------------

def ref_forward(x, params, *, use_1x1conv, stride, matmul_dtype=jnp.float32):
    """Reference.  matmul_dtype=bfloat16 mirrors the kernel's MXU input
    precision (f32 accumulation in both cases)."""
    def conv(x, w, b, s, p):
        y = jax.lax.conv_general_dilated(
            x.astype(matmul_dtype), w.astype(matmul_dtype),
            window_strides=(s, s), padding=[(p, p), (p, p)],
            dimension_numbers=("NCHW", "OIHW", "NCHW"),
            preferred_element_type=jnp.float32)
        return y + b[None, :, None, None]

    def bn(y, g, be):
        mean = jnp.mean(y, axis=(0, 2, 3), keepdims=True)
        var = jnp.mean(jnp.square(y - mean), axis=(0, 2, 3), keepdims=True)
        return (g[None, :, None, None] * (y - mean) * jax.lax.rsqrt(var + EPS)
                + be[None, :, None, None])

    y = jax.nn.relu(bn(conv(x, params["w1"], params["b1"], stride, 0),
                       params["g1"], params["be1"]))
    y = jax.nn.relu(bn(conv(y, params["w2"], params["b2"], 1, 1),
                       params["g2"], params["be2"]))
    y = bn(conv(y, params["w3"], params["b3"], 1, 0),
           params["g3"], params["be3"])
    if use_1x1conv:
        x = conv(x, params["w4"], params["b4"], stride, 0)
    return jax.nn.relu(y + x.astype(jnp.float32))


# ---------------------------------------------------------------------------

if __name__ == "__main__":
    # batch=2, in_channels=4, 16x16 spatial, out_channels=16 (mid = out//4 = 4),
    # stride=2 with a 1x1 projection shortcut.
    N, Cin, H, W = 2, 4, 16, 16
    out_c, stride, use_1x1conv = 16, 2, True
    mid = out_c // 4

    key = jax.random.PRNGKey(0)
    ks = jax.random.split(key, 14)
    params = {
        "w1": 0.5 * jax.random.normal(ks[0], (mid, Cin, 1, 1), jnp.float32),
        "b1": 0.1 * jax.random.normal(ks[1], (mid,), jnp.float32),
        "w2": 0.25 * jax.random.normal(ks[2], (mid, mid, 3, 3), jnp.float32),
        "b2": 0.1 * jax.random.normal(ks[3], (mid,), jnp.float32),
        "w3": 0.5 * jax.random.normal(ks[4], (out_c, mid, 1, 1), jnp.float32),
        "b3": 0.1 * jax.random.normal(ks[5], (out_c,), jnp.float32),
        "w4": 0.5 * jax.random.normal(ks[6], (out_c, Cin, 1, 1), jnp.float32),
        "b4": 0.1 * jax.random.normal(ks[7], (out_c,), jnp.float32),
        "g1": 1.0 + 0.1 * jax.random.normal(ks[8], (mid,), jnp.float32),
        "be1": 0.1 * jax.random.normal(ks[9], (mid,), jnp.float32),
        "g2": 1.0 + 0.1 * jax.random.normal(ks[10], (mid,), jnp.float32),
        "be2": 0.1 * jax.random.normal(ks[11], (mid,), jnp.float32),
        "g3": 1.0 + 0.1 * jax.random.normal(ks[12], (out_c,), jnp.float32),
        "be3": jnp.zeros((out_c,), jnp.float32),
    }
    x = jax.random.normal(ks[13], (N, Cin, H, W), jnp.float32)

    out = improved_residual_forward(x, params,
                                    use_1x1conv=use_1x1conv, stride=stride)
    out = jax.block_until_ready(out)
    assert out.shape == (N, out_c, H // stride, W // stride), out.shape

    # primary check: reference with the same matmul precision (bf16 MXU inputs,
    # f32 accumulation) -- isolates kernel correctness from bf16 rounding.
    ref_bf = ref_forward(x, params, use_1x1conv=use_1x1conv, stride=stride,
                         matmul_dtype=jnp.bfloat16)
    err_bf = float(jnp.max(jnp.abs(out - ref_bf)))
    assert jnp.allclose(out, ref_bf, atol=2e-2, rtol=2e-2), \
        f"bf16-matched ref: max abs err={err_bf}"

    # sanity check against the full-f32 reference (loose: bf16 MXU rounding
    # propagated through three BatchNorm rescalings).
    ref32 = ref_forward(x, params, use_1x1conv=use_1x1conv, stride=stride)
    err32 = float(jnp.max(jnp.abs(out - ref32)))
    assert jnp.allclose(out, ref32, atol=5e-2, rtol=5e-2), \
        f"f32 ref: max abs err={err32}"

    print("KERNEL_OK")
</pallas_src>

<mosaic_0001>
module attributes {stable_mosaic.version = 11 : i64} {
  func.func @kernel(%arg0: i32, %arg1: memref<128x4xbf16, #tpu.memory_space<vmem>>, %arg2: memref<4x4xbf16, #tpu.memory_space<vmem>>, %arg3: memref<4x16xbf16, #tpu.memory_space<vmem>>, %arg4: memref<1x16xf32, #tpu.memory_space<vmem>>, %arg5: memref<128x4xf32, #tpu.memory_space<vmem>>, %arg6: memref<128x16xf32, #tpu.memory_space<vmem>>, %arg7: memref<1x4xf32, #tpu.memory_space<vmem>>, %arg8: memref<1x4xf32, #tpu.memory_space<vmem>>) attributes {dimension_semantics = [#tpu.dimension_semantics<arbitrary>], iteration_bounds = array<i64: 1>, scalar_prefetch = 0 : i64, scratch_operands = 0 : i64, tpu.core_type = #tpu.core_type<tc>, window_params = [{transform_indices = @transform_0, window_bounds = array<i64: 128, 4>}, {pipeline_mode = #tpu.pipeline_mode<synchronous>, transform_indices = @transform_1, window_bounds = array<i64: 4, 4>}, {pipeline_mode = #tpu.pipeline_mode<synchronous>, transform_indices = @transform_2, window_bounds = array<i64: 4, 16>}, {pipeline_mode = #tpu.pipeline_mode<synchronous>, transform_indices = @transform_3, window_bounds = array<i64: 1, 16>}, {transform_indices = @transform_4, window_bounds = array<i64: 128, 4>}, {transform_indices = @transform_5, window_bounds = array<i64: 128, 16>}, {pipeline_mode = #tpu.pipeline_mode<synchronous>, transform_indices = @transform_6, window_bounds = array<i64: 1, 4>}, {pipeline_mode = #tpu.pipeline_mode<synchronous>, transform_indices = @transform_7, window_bounds = array<i64: 1, 4>}]} {
    %c0_i32 = arith.constant 0 : i32
    %0 = arith.cmpi eq, %arg0, %c0_i32 : i32
    %1 = arith.extui %0 : i1 to i32
    %c0_i32_0 = arith.constant 0 : i32
    %2 = arith.cmpi ne, %1, %c0_i32_0 : i32
    scf.if %2 {
      %cst_23 = arith.constant 0.000000e+00 : f32
      %24 = vector.broadcast %cst_23 : f32 to vector<1x4xf32>
      %c0_24 = arith.constant 0 : index
      %c0_25 = arith.constant 0 : index
      %25 = vector.load %arg7[%c0_24, %c0_25] : memref<1x4xf32, #tpu.memory_space<vmem>>, vector<1x4xf32>
      tpu.vector_store %arg7[%c0_24, %c0_25], %24 {strides = array<i32>} : memref<1x4xf32, #tpu.memory_space<vmem>>, vector<1x4xf32>,
      %cst_26 = arith.constant 0.000000e+00 : f32
      %26 = vector.broadcast %cst_26 : f32 to vector<1x4xf32>
      %c0_27 = arith.constant 0 : index
      %c0_28 = arith.constant 0 : index
      %27 = vector.load %arg8[%c0_27, %c0_28] : memref<1x4xf32, #tpu.memory_space<vmem>>, vector<1x4xf32>
      tpu.vector_store %arg8[%c0_27, %c0_28], %26 {strides = array<i32>} : memref<1x4xf32, #tpu.memory_space<vmem>>, vector<1x4xf32>,
    } else {
    }
    %c0 = arith.constant 0 : index
    %c0_1 = arith.constant 0 : index
    %3 = vector.load %arg1[%c0, %c0_1] : memref<128x4xbf16, #tpu.memory_space<vmem>>, vector<128x4xbf16>
    %c0_2 = arith.constant 0 : index
    %c0_3 = arith.constant 0 : index
    %4 = vector.load %arg2[%c0_2, %c0_3] : memref<4x4xbf16, #tpu.memory_space<vmem>>, vector<4x4xbf16>
    %cst = arith.constant dense<0.000000e+00> : vector<128x4xf32>
    %5 = tpu.matmul %3, %4, %cst {dimension_numbers = #tpu.dot_dimension_numbers<[1], [0], [0], [1], [0, 0, 1, 1], [], []>} : vector<128x4xbf16>, vector<4x4xbf16>, vector<128x4xf32> -> vector<128x4xf32>
    %c0_4 = arith.constant 0 : index
    %c0_5 = arith.constant 0 : index
    %6 = vector.load %arg5[%c0_4, %c0_5] : memref<128x4xf32, #tpu.memory_space<vmem>>, vector<128x4xf32>
    tpu.vector_store %arg5[%c0_4, %c0_5], %5 {strides = array<i32>} : memref<128x4xf32, #tpu.memory_space<vmem>>, vector<128x4xf32>,
    %c0_6 = arith.constant 0 : index
    %c0_7 = arith.constant 0 : index
    %7 = vector.load %arg3[%c0_6, %c0_7] : memref<4x16xbf16, #tpu.memory_space<vmem>>, vector<4x16xbf16>
    %cst_8 = arith.constant dense<0.000000e+00> : vector<128x16xf32>
    %8 = tpu.matmul %3, %7, %cst_8 {dimension_numbers = #tpu.dot_dimension_numbers<[1], [0], [0], [1], [0, 0, 1, 1], [], []>} : vector<128x4xbf16>, vector<4x16xbf16>, vector<128x16xf32> -> vector<128x16xf32>
    %c0_9 = arith.constant 0 : index
    %c0_10 = arith.constant 0 : index
    %9 = vector.load %arg4[%c0_9, %c0_10] : memref<1x16xf32, #tpu.memory_space<vmem>>, vector<1x16xf32>
    %10 = vector.broadcast %9 : vector<1x16xf32> to vector<128x16xf32>
    %11 = arith.addf %8, %10 : vector<128x16xf32>
    %c0_11 = arith.constant 0 : index
    %c0_12 = arith.constant 0 : index
    %12 = vector.load %arg6[%c0_11, %c0_12] : memref<128x16xf32, #tpu.memory_space<vmem>>, vector<128x16xf32>
    tpu.vector_store %arg6[%c0_11, %c0_12], %11 {strides = array<i32>} : memref<128x16xf32, #tpu.memory_space<vmem>>, vector<128x16xf32>,
    %c0_13 = arith.constant 0 : index
    %c0_14 = arith.constant 0 : index
    %13 = vector.load %arg7[%c0_13, %c0_14] : memref<1x4xf32, #tpu.memory_space<vmem>>, vector<1x4xf32>
    %cst_15 = arith.constant dense<0.000000e+00> : vector<4xf32>
    %14 = vector.multi_reduction <add>, %5, %cst_15 [0] : vector<128x4xf32> to vector<4xf32>
    %15 = vector.shape_cast %14 : vector<4xf32> to vector<1x4xf32>
    %16 = arith.addf %13, %15 : vector<1x4xf32>
    %c0_16 = arith.constant 0 : index
    %c0_17 = arith.constant 0 : index
    %17 = vector.load %arg7[%c0_16, %c0_17] : memref<1x4xf32, #tpu.memory_space<vmem>>, vector<1x4xf32>
    tpu.vector_store %arg7[%c0_16, %c0_17], %16 {strides = array<i32>} : memref<1x4xf32, #tpu.memory_space<vmem>>, vector<1x4xf32>,
    %c0_18 = arith.constant 0 : index
    %c0_19 = arith.constant 0 : index
    %18 = vector.load %arg8[%c0_18, %c0_19] : memref<1x4xf32, #tpu.memory_space<vmem>>, vector<1x4xf32>
    %19 = arith.mulf %5, %5 : vector<128x4xf32>
    %cst_20 = arith.constant dense<0.000000e+00> : vector<4xf32>
    %20 = vector.multi_reduction <add>, %19, %cst_20 [0] : vector<128x4xf32> to vector<4xf32>
    %21 = vector.shape_cast %20 : vector<4xf32> to vector<1x4xf32>
    %22 = arith.addf %18, %21 : vector<1x4xf32>
    %c0_21 = arith.constant 0 : index
    %c0_22 = arith.constant 0 : index
    %23 = vector.load %arg8[%c0_21, %c0_22] : memref<1x4xf32, #tpu.memory_space<vmem>>, vector<1x4xf32>
    tpu.vector_store %arg8[%c0_21, %c0_22], %22 {strides = array<i32>} : memref<1x4xf32, #tpu.memory_space<vmem>>, vector<1x4xf32>,
    return
  }
  func.func @transform_0(%arg0: i32) -> (i32, i32) {
    %c0_i32 = arith.constant 0 : i32
    %c0_i32_0 = arith.constant 0 : i32
    return %arg0, %c0_i32 : i32, i32
  }
  func.func @transform_1(%arg0: i32) -> (i32, i32) {
    %c0_i32 = arith.constant 0 : i32
    %c0_i32_0 = arith.constant 0 : i32
    %c0_i32_1 = arith.constant 0 : i32
    return %c0_i32, %c0_i32_0 : i32, i32
  }
  func.func @transform_2(%arg0: i32) -> (i32, i32) {
    %c0_i32 = arith.constant 0 : i32
    %c0_i32_0 = arith.constant 0 : i32
    %c0_i32_1 = arith.constant 0 : i32
    return %c0_i32, %c0_i32_0 : i32, i32
  }
  func.func @transform_3(%arg0: i32) -> (i32, i32) {
    %c0_i32 = arith.constant 0 : i32
    %c0_i32_0 = arith.constant 0 : i32
    %c0_i32_1 = arith.constant 0 : i32
    return %c0_i32, %c0_i32_0 : i32, i32
  }
  func.func @transform_4(%arg0: i32) -> (i32, i32) {
    %c0_i32 = arith.constant 0 : i32
    %c0_i32_0 = arith.constant 0 : i32
    return %arg0, %c0_i32 : i32, i32
  }
  func.func @transform_5(%arg0: i32) -> (i32, i32) {
    %c0_i32 = arith.constant 0 : i32
    %c0_i32_0 = arith.constant 0 : i32
    return %arg0, %c0_i32 : i32, i32
  }
  func.func @transform_6(%arg0: i32) -> (i32, i32) {
    %c0_i32 = arith.constant 0 : i32
    %c0_i32_0 = arith.constant 0 : i32
    %c0_i32_1 = arith.constant 0 : i32
    return %c0_i32, %c0_i32_0 : i32, i32
  }
  func.func @transform_7(%arg0: i32) -> (i32, i32) {
    %c0_i32 = arith.constant 0 : i32
    %c0_i32_0 = arith.constant 0 : i32
    %c0_i32_1 = arith.constant 0 : i32
    return %c0_i32, %c0_i32_0 : i32, i32
  }
}

</mosaic_0001>

<llo_original>
// kernel: tpu_custom_call.1
$region0: #{tpu_custom_call.1}
  #allocation0 [shape = 'u32[]', space=smem, size = 0x4, offset = 0x4, fixed_abs, tag = 'smem constant byte address 0x4 - core index']
  #allocation1 [shape = 'u32[144,128]{1,0:T(1,128)}', space=vmem, size = 0x12000, scoped, tag = 'internal scratch']
  %s0 = inlined_call_operand.vmem [shape: bf16[128,4], index: 0, kind: input, shape index: {}]
  %s1 = inlined_call_operand.vmem [shape: bf16[4,4], index: 1, kind: input, shape index: {}]
  %s2 = inlined_call_operand.vmem [shape: bf16[4,16], index: 2, kind: input, shape index: {}]
  %s3 = inlined_call_operand.vmem [shape: f32[1,16], index: 3, kind: input, shape index: {}]
  %s4 = inlined_call_operand.vmem [shape: f32[128,4], index: 4, kind: output, shape index: {0}]
  %s5 = inlined_call_operand.vmem [shape: f32[128,16], index: 5, kind: output, shape index: {1}]
  %s6 = inlined_call_operand.hbm [shape: f32[1,4], index: 6, kind: output, shape index: {2}]
  %s7 = inlined_call_operand.hbm [shape: f32[1,4], index: 7, kind: output, shape index: {3}]
  %8 = xla_tuple %s4, %s5, %s6, %s7
  %s9 = sld [smem:[#allocation0]]
  $region54: #{tpu_custom_call.1} parent=0
    _
  %s11 = ssub.s32 1, %s9
  %s12 = scalar_select 0, %s11, %s9
  $region1: #{tpu_custom_call.1} parent=0
    #allocation2 [shape = 'u8[512]{0}', space=vmem, size = 0x400, scoped, tag = 'output window, operand 2, single buffered']
    #allocation3 [shape = 's32[1]{0}', space=sflag, size = 0x4, scoped, tag = 'scoped memory for tpu_custom_call.1']
    #allocation4 [shape = 'u8[512]{0}', space=vmem, size = 0x400, scoped, tag = 'output window, operand 3, single buffered']
    #allocation5 [shape = 's32[1]{0}', space=sflag, size = 0x4, scoped, tag = 'scoped memory for tpu_custom_call.1']
    %13 = vsyncpa [#allocation3], 0
    %14 = vsyncpa [#allocation5], 0
    // Predicated region
    $region2: #{tpu_custom_call.1} parent=1 // pred_check
      _
    $region3: #{tpu_custom_call.1} parent=1 // pred_check_branch
      %16 = sbr.rel (0) target = $region5
    $region4: #{tpu_custom_call.1} parent=1 // pred_region
      _
    $region5: #{tpu_custom_call.1} parent=1 // pred_fallthru
      _
    // Predicated region
    $region6: #{tpu_custom_call.1} parent=1 // pred_check
      _
    $region7: #{tpu_custom_call.1} parent=1 // pred_check_branch
      %18 = sbr.rel (0) target = $region9
    $region8: #{tpu_custom_call.1} parent=1 // pred_region
      _
    $region9: #{tpu_custom_call.1} parent=1 // pred_fallthru
      _
    // Predicated region
    $region10: #{tpu_custom_call.1} parent=1 // pred_check
      _
    $region11: #{tpu_custom_call.1} parent=1 // pred_check_branch
      %20 = sbr.rel (0) target = $region13
    $region12: #{tpu_custom_call.1} parent=1 // pred_region
      _
    $region13: #{tpu_custom_call.1} parent=1 // pred_fallthru
      _
    // Predicated region
    $region14: #{tpu_custom_call.1} parent=1 // pred_check
      _
    $region15: #{tpu_custom_call.1} parent=1 // pred_check_branch
      %22 = sbr.rel (0) target = $region17
    $region16: #{tpu_custom_call.1} parent=1 // pred_region
      _
    $region17: #{tpu_custom_call.1} parent=1 // pred_fallthru
      _
    %p24 = scmp.eq.s32.totalorder 0, 0
    // Predicated region
    $region18: #{tpu_custom_call.1} parent=1 // pred_check
      %p25 = pneg %p24
    $region19: #{tpu_custom_call.1} parent=1 // pred_check_branch
      %27 = sbr.rel (%p25) target = $region21
    $region20: #{tpu_custom_call.1} parent=1 // pred_region
      %vm28 = vcmask 24576
      %29 = vst.msk [vmem:[#allocation2] sm:$0x1] %vm28, 0.0
      %30 = vst.msk [vmem:[#allocation4] sm:$0x1] %vm28, 0.0
    $region21: #{tpu_custom_call.1} parent=1 // pred_fallthru
      _
    %v31 = vld [vmem:[%s0] sm:$0xf]
    %v32 = vld [vmem:[%s0 + $0x4] sm:$0xf]
    %v33 = vld [vmem:[%s0 + $0x8] sm:$0xf]
    %v34 = vld [vmem:[%s0 + $0xc] sm:$0xf]
    %v35 = vld [vmem:[%s0 + $0x10] sm:$0xf]
    %v36 = vld [vmem:[%s0 + $0x14] sm:$0xf]
    %v37 = vld [vmem:[%s0 + $0x18] sm:$0xf]
    %v38 = vld [vmem:[%s0 + $0x1c] sm:$0xf]
    %v39 = vld [vmem:[%s0 + $0x20] sm:$0xf]
    %v40 = vld [vmem:[%s0 + $0x24] sm:$0xf]
    %v41 = vld [vmem:[%s0 + $0x28] sm:$0xf]
    %v42 = vld [vmem:[%s0 + $0x2c] sm:$0xf]
    %v43 = vld [vmem:[%s0 + $0x30] sm:$0xf]
    %v44 = vld [vmem:[%s0 + $0x34] sm:$0xf]
    %v45 = vld [vmem:[%s0 + $0x38] sm:$0xf]
    %v46 = vld [vmem:[%s0 + $0x3c] sm:$0xf]
    %v47 = vld [vmem:[%s1] sm:$0x3]
    %v64 = vunpack.c.l.b16 %v31
    %v65 = vunpack.c.l.b16 %v32
    %v66 = vunpack.c.l.b16 %v33
    %v67 = vunpack.c.l.b16 %v34
    %v68 = vunpack.c.l.b16 %v35
    %v69 = vunpack.c.l.b16 %v36
    %v70 = vunpack.c.l.b16 %v37
    %v71 = vunpack.c.l.b16 %v38
    %v72 = vunpack.c.l.b16 %v39
    %v73 = vunpack.c.l.b16 %v40
    %v74 = vunpack.c.l.b16 %v41
    %v75 = vunpack.c.l.b16 %v42
    %v76 = vunpack.c.l.b16 %v43
    %v77 = vunpack.c.l.b16 %v44
    %v78 = vunpack.c.l.b16 %v45
    %v79 = vunpack.c.l.b16 %v46
    %v80 = vpack.c.b16 %v65, %v64
    %v81 = vpack.c.b16 %v67, %v66
    %v82 = vpack.c.b16 %v69, %v68
    %v83 = vpack.c.b16 %v71, %v70
    %v84 = vpack.c.b16 %v73, %v72
    %v85 = vpack.c.b16 %v75, %v74
    %v86 = vpack.c.b16 %v77, %v76
    %v87 = vpack.c.b16 %v79, %v78
    %vm88 = vcmask 31744
    %v90 = vsel %vm88, %v80, 0
    %v93 = vsel %vm88, %v81, 0
    %v96 = vsel %vm88, %v82, 0
    %v99 = vsel %vm88, %v83, 0
    %v102 = vsel %vm88, %v84, 0
    %v105 = vsel %vm88, %v85, 0
    %v108 = vsel %vm88, %v86, 0
    %v111 = vsel %vm88, %v87, 0
    %vm113 = vcmask 1041408
    %v115 = vsel %vm113, %v47, 0
    %117 = vmatprep.subr.bf16.mxu0 0
    %118 = vmatpush1.bf16.msra.mxu0 0
    %119 = vmatprep.subr.bf16.mxu0 0
    %120 = vmatpush1.bf16.msra.mxu0 0
    %121 = vmatprep.subr.bf16.mxu0 0
    %122 = vmatpush1.bf16.msra.mxu0 0
    %123 = vmatprep.subr.bf16.mxu0 0
    %124 = vmatpush1.bf16.msra.mxu0 0
    %125 = vmatprep.subr.bf16.mxu0 0
    %126 = vmatpush1.bf16.msra.mxu0 0
    %127 = vmatprep.subr.bf16.mxu0 0
    %128 = vmatpush1.bf16.msra.mxu0 0
    %129 = vmatprep.subr.bf16.mxu0 0
    %130 = vmatpush1.bf16.msra.mxu0 0
    %131 = vmatprep.subr.bf16.mxu0 0
    %132 = vmatpush1.bf16.msra.mxu0 %v115
    %133 = vmatprep.subr.bf16.mxu0 0
    %134 = vmatpush2.bf16.msra.mxu0 0
    %135 = vmatprep.subr.bf16.mxu0 0
    %136 = vmatpush2.bf16.msra.mxu0 0
    %137 = vmatprep.subr.bf16.mxu0 0
    %138 = vmatpush2.bf16.msra.mxu0 0
    %139 = vmatprep.subr.bf16.mxu0 0
    %140 = vmatpush2.bf16.msra.mxu0 0
    %141 = vmatprep.subr.bf16.mxu0 0
    %142 = vmatpush2.bf16.msra.mxu0 0
    %143 = vmatprep.subr.bf16.mxu0 0
    %144 = vmatpush2.bf16.msra.mxu0 0
    %145 = vmatprep.subr.bf16.mxu0 0
    %146 = vmatpush2.bf16.msra.mxu0 0
    %147 = vmatprep.subr.bf16.mxu0 0
    %148 = vmatpush2.bf16.msra.mxu0 0
    %149 = vmatprep.mubr.bf16.mxu0 0
    %150 = vmatmul.mubr.bf16.gmra.mxu0 %v90
    %v151 = vpop.f32.mrf.mxu0
    %v152 = vadd.f32 0.0, %v151
    %v153 = vpop.f32.mrf.mxu0
    %v154 = vpop.f32.mrf.mxu0
    %v155 = vadd.f32 0.0, %v154
    %v156 = vpop.f32.mrf.mxu0
    %157 = vmatprep.mubr.bf16.mxu0 0
    %158 = vmatmul.mubr.bf16.gmra.mxu0 %v93
    %v159 = vpop.f32.mrf.mxu0
    %v160 = vadd.f32 0.0, %v159
    %v161 = vpop.f32.mrf.mxu0
    %v162 = vpop.f32.mrf.mxu0
    %v163 = vadd.f32 0.0, %v162
    %v164 = vpop.f32.mrf.mxu0
    %165 = vmatprep.mubr.bf16.mxu0 0
    %166 = vmatmul.mubr.bf16.gmra.mxu0 %v96
    %v167 = vpop.f32.mrf.mxu0
    %v168 = vadd.f32 0.0, %v167
    %v169 = vpop.f32.mrf.mxu0
    %v170 = vpop.f32.mrf.mxu0
    %v171 = vadd.f32 0.0, %v170
    %v172 = vpop.f32.mrf.mxu0
    %173 = vmatprep.mubr.bf16.mxu0 0
    %174 = vmatmul.mubr.bf16.gmra.mxu0 %v99
    %v175 = vpop.f32.mrf.mxu0
    %v176 = vadd.f32 0.0, %v175
    %v177 = vpop.f32.mrf.mxu0
    %v178 = vpop.f32.mrf.mxu0
    %v179 = vadd.f32 0.0, %v178
    %v180 = vpop.f32.mrf.mxu0
    %181 = vmatprep.mubr.bf16.mxu0 0
    %182 = vmatmul.mubr.bf16.gmra.mxu0 %v102
    %v183 = vpop.f32.mrf.mxu0
    %v184 = vadd.f32 0.0, %v183
    %v185 = vpop.f32.mrf.mxu0
    %v186 = vpop.f32.mrf.mxu0
    %v187 = vadd.f32 0.0, %v186
    %v188 = vpop.f32.mrf.mxu0
    %189 = vmatprep.mubr.bf16.mxu0 0
    %190 = vmatmul.mubr.bf16.gmra.mxu0 %v105
    %v191 = vpop.f32.mrf.mxu0
    %v192 = vadd.f32 0.0, %v191
    %v193 = vpop.f32.mrf.mxu0
    %v194 = vpop.f32.mrf.mxu0
    %v195 = vadd.f32 0.0, %v194
    %v196 = vpop.f32.mrf.mxu0
    %197 = vmatprep.mubr.bf16.mxu0 0
    %198 = vmatmul.mubr.bf16.gmra.mxu0 %v108
    %v199 = vpop.f32.mrf.mxu0
    %v200 = vadd.f32 0.0, %v199
    %v201 = vpop.f32.mrf.mxu0
    %v202 = vpop.f32.mrf.mxu0
    %v203 = vadd.f32 0.0, %v202
    %v204 = vpop.f32.mrf.mxu0
    %205 = vmatprep.mubr.bf16.mxu0 0
    %206 = vmatmul.mubr.bf16.gmra.mxu0 %v111
    %v207 = vpop.f32.mrf.mxu0
    %v208 = vadd.f32 0.0, %v207
    %v209 = vpop.f32.mrf.mxu0
    %v210 = vpop.f32.mrf.mxu0
    %v211 = vadd.f32 0.0, %v210
    %v212 = vpop.f32.mrf.mxu0
    %213 = vdwg.mxu0
    %214 = vst.msk [vmem:[%s4] sm:$0xff] %vm88, %v152
    %215 = vst.msk [vmem:[%s4 + $0x8] sm:$0xff] %vm88, %v155
    %216 = vst.msk [vmem:[%s4 + $0x10] sm:$0xff] %vm88, %v160
    %217 = vst.msk [vmem:[%s4 + $0x18] sm:$0xff] %vm88, %v163
    %218 = vst.msk [vmem:[%s4 + $0x20] sm:$0xff] %vm88, %v168
    %219 = vst.msk [vmem:[%s4 + $0x28] sm:$0xff] %vm88, %v171
    %220 = vst.msk [vmem:[%s4 + $0x30] sm:$0xff] %vm88, %v176
    %221 = vst.msk [vmem:[%s4 + $0x38] sm:$0xff] %vm88, %v179
    %222 = vst.msk [vmem:[%s4 + $0x40] sm:$0xff] %vm88, %v184
    %223 = vst.msk [vmem:[%s4 + $0x48] sm:$0xff] %vm88, %v187
    %224 = vst.msk [vmem:[%s4 + $0x50] sm:$0xff] %vm88, %v192
    %225 = vst.msk [vmem:[%s4 + $0x58] sm:$0xff] %vm88, %v195
    %226 = vst.msk [vmem:[%s4 + $0x60] sm:$0xff] %vm88, %v200
    %227 = vst.msk [vmem:[%s4 + $0x68] sm:$0xff] %vm88, %v203
    %228 = vst.msk [vmem:[%s4 + $0x70] sm:$0xff] %vm88, %v208
    %229 = vst.msk [vmem:[%s4 + $0x78] sm:$0xff] %vm88, %v211
    %v230 = vld [vmem:[%s2] sm:$0x3]
    %v231 = vld [vmem:[%s3] sm:$0x1]
    %v233 = vlaneseq
    %v234 = vshrl.u32 %v233, 7
    %v235 = vsub.s32 0, %v234
    %v236 = vrot.slane %v231, %v235
    %v239 = vsel %vm113, %v230, 0
    %241 = vmatprep.subr.bf16.mxu0 0
    %242 = vmatpush1.bf16.msra.mxu0 0
    %243 = vmatprep.subr.bf16.mxu0 0
    %244 = vmatpush1.bf16.msra.mxu0 0
    %245 = vmatprep.subr.bf16.mxu0 0
    %246 = vmatpush1.bf16.msra.mxu0 0
    %247 = vmatprep.subr.bf16.mxu0 0
    %248 = vmatpush1.bf16.msra.mxu0 0
    %249 = vmatprep.subr.bf16.mxu0 0
    %250 = vmatpush1.bf16.msra.mxu0 0
    %251 = vmatprep.subr.bf16.mxu0 0
    %252 = vmatpush1.bf16.msra.mxu0 0
    %253 = vmatprep.subr.bf16.mxu0 0
    %254 = vmatpush1.bf16.msra.mxu0 0
    %255 = vmatprep.subr.bf16.mxu0 0
    %256 = vmatpush1.bf16.msra.mxu0 %v239
    %257 = vmatprep.subr.bf16.mxu0 0
    %258 = vmatpush2.bf16.msra.mxu0 0
    %259 = vmatprep.subr.bf16.mxu0 0
    %260 = vmatpush2.bf16.msra.mxu0 0
    %261 = vmatprep.subr.bf16.mxu0 0
    %262 = vmatpush2.bf16.msra.mxu0 0
    %263 = vmatprep.subr.bf16.mxu0 0
    %264 = vmatpush2.bf16.msra.mxu0 0
    %265 = vmatprep.subr.bf16.mxu0 0
    %266 = vmatpush2.bf16.msra.mxu0 0
    %267 = vmatprep.subr.bf16.mxu0 0
    %268 = vmatpush2.bf16.msra.mxu0 0
    %269 = vmatprep.subr.bf16.mxu0 0
    %270 = vmatpush2.bf16.msra.mxu0 0
    %271 = vmatprep.subr.bf16.mxu0 0
    %272 = vmatpush2.bf16.msra.mxu0 0
    %273 = vmatprep.mubr.bf16.mxu0 0
    %274 = vmatmul.mubr.bf16.gmra.mxu0 %v90
    %v275 = vpop.f32.mrf.mxu0
    %v276 = vadd.f32 %v236, %v275
    %v277 = vpop.f32.mrf.mxu0
    %v278 = vpop.f32.mrf.mxu0
    %v279 = vadd.f32 %v236, %v278
    %v280 = vpop.f32.mrf.mxu0
    %281 = vmatprep.mubr.bf16.mxu0 0
    %282 = vmatmul.mubr.bf16.gmra.mxu0 %v93
    %v283 = vpop.f32.mrf.mxu0
    %v284 = vadd.f32 %v236, %v283
    %v285 = vpop.f32.mrf.mxu0
    %v286 = vpop.f32.mrf.mxu0
    %v287 = vadd.f32 %v236, %v286
    %v288 = vpop.f32.mrf.mxu0
    %289 = vmatprep.mubr.bf16.mxu0 0
    %290 = vmatmul.mubr.bf16.gmra.mxu0 %v96
    %v291 = vpop.f32.mrf.mxu0
    %v292 = vadd.f32 %v236, %v291
    %v293 = vpop.f32.mrf.mxu0
    %v294 = vpop.f32.mrf.mxu0
    %v295 = vadd.f32 %v236, %v294
    %v296 = vpop.f32.mrf.mxu0
    %297 = vmatprep.mubr.bf16.mxu0 0
    %298 = vmatmul.mubr.bf16.gmra.mxu0 %v99
    %v299 = vpop.f32.mrf.mxu0
    %v300 = vadd.f32 %v236, %v299
    %v301 = vpop.f32.mrf.mxu0
    %v302 = vpop.f32.mrf.mxu0
    %v303 = vadd.f32 %v236, %v302
    %v304 = vpop.f32.mrf.mxu0
    %305 = vmatprep.mubr.bf16.mxu0 0
    %306 = vmatmul.mubr.bf16.gmra.mxu0 %v102
    %v307 = vpop.f32.mrf.mxu0
    %v308 = vadd.f32 %v236, %v307
    %v309 = vpop.f32.mrf.mxu0
    %v310 = vpop.f32.mrf.mxu0
    %v311 = vadd.f32 %v236, %v310
    %v312 = vpop.f32.mrf.mxu0
    %313 = vmatprep.mubr.bf16.mxu0 0
    %314 = vmatmul.mubr.bf16.gmra.mxu0 %v105
    %v315 = vpop.f32.mrf.mxu0
    %v316 = vadd.f32 %v236, %v315
    %v317 = vpop.f32.mrf.mxu0
    %v318 = vpop.f32.mrf.mxu0
    %v319 = vadd.f32 %v236, %v318
    %v320 = vpop.f32.mrf.mxu0
    %321 = vmatprep.mubr.bf16.mxu0 0
    %322 = vmatmul.mubr.bf16.gmra.mxu0 %v108
    %v323 = vpop.f32.mrf.mxu0
    %v324 = vadd.f32 %v236, %v323
    %v325 = vpop.f32.mrf.mxu0
    %v326 = vpop.f32.mrf.mxu0
    %v327 = vadd.f32 %v236, %v326
    %v328 = vpop.f32.mrf.mxu0
    %329 = vmatprep.mubr.bf16.mxu0 0
    %330 = vmatmul.mubr.bf16.gmra.mxu0 %v111
    %v331 = vpop.f32.mrf.mxu0
    %v332 = vadd.f32 %v236, %v331
    %v333 = vpop.f32.mrf.mxu0
    %v334 = vpop.f32.mrf.mxu0
    %v335 = vadd.f32 %v236, %v334
    %v336 = vpop.f32.mrf.mxu0
    %337 = vdwg.mxu0
    %vm338 = vcmask 130048
    %339 = vst.msk [vmem:[%s5] sm:$0xff] %vm338, %v276
    %340 = vst.msk [vmem:[%s5 + $0x8] sm:$0xff] %vm338, %v279
    %341 = vst.msk [vmem:[%s5 + $0x10] sm:$0xff] %vm338, %v284
    %342 = vst.msk [vmem:[%s5 + $0x18] sm:$0xff] %vm338, %v287
    %343 = vst.msk [vmem:[%s5 + $0x20] sm:$0xff] %vm338, %v292
    %344 = vst.msk [vmem:[%s5 + $0x28] sm:$0xff] %vm338, %v295
    %345 = vst.msk [vmem:[%s5 + $0x30] sm:$0xff] %vm338, %v300
    %346 = vst.msk [vmem:[%s5 + $0x38] sm:$0xff] %vm338, %v303
    %347 = vst.msk [vmem:[%s5 + $0x40] sm:$0xff] %vm338, %v308
    %348 = vst.msk [vmem:[%s5 + $0x48] sm:$0xff] %vm338, %v311
    %349 = vst.msk [vmem:[%s5 + $0x50] sm:$0xff] %vm338, %v316
    %350 = vst.msk [vmem:[%s5 + $0x58] sm:$0xff] %vm338, %v319
    %351 = vst.msk [vmem:[%s5 + $0x60] sm:$0xff] %vm338, %v324
    %352 = vst.msk [vmem:[%s5 + $0x68] sm:$0xff] %vm338, %v327
    %353 = vst.msk [vmem:[%s5 + $0x70] sm:$0xff] %vm338, %v332
    %354 = vst.msk [vmem:[%s5 + $0x78] sm:$0xff] %vm338, %v335
    %v355 = vld [vmem:[#allocation2] sm:$0x1]
    %v356 = vsel %vm88, %v152, 0.0
    %v357 = vsel %vm88, %v155, 0.0
    %v358 = vadd.f32 %v356, %v357
    %v359 = vsel %vm88, %v160, 0.0
    %v360 = vadd.f32 %v358, %v359
    %v361 = vsel %vm88, %v163, 0.0
    %v362 = vadd.f32 %v360, %v361
    %v363 = vsel %vm88, %v168, 0.0
    %v364 = vadd.f32 %v362, %v363
    %v365 = vsel %vm88, %v171, 0.0
    %v366 = vadd.f32 %v364, %v365
    %v367 = vsel %vm88, %v176, 0.0
    %v368 = vadd.f32 %v366, %v367
    %v369 = vsel %vm88, %v179, 0.0
    %v370 = vadd.f32 %v368, %v369
    %v371 = vsel %vm88, %v184, 0.0
    %v372 = vadd.f32 %v370, %v371
    %v373 = vsel %vm88, %v187, 0.0
    %v374 = vadd.f32 %v372, %v373
    %v375 = vsel %vm88, %v192, 0.0
    %v376 = vadd.f32 %v374, %v375
    %v377 = vsel %vm88, %v195, 0.0
    %v378 = vadd.f32 %v376, %v377
    %v379 = vsel %vm88, %v200, 0.0
    %v380 = vadd.f32 %v378, %v379
    %v381 = vsel %vm88, %v203, 0.0
    %v382 = vadd.f32 %v380, %v381
    %v383 = vsel %vm88, %v208, 0.0
    %v384 = vadd.f32 %v382, %v383
    %v385 = vsel %vm88, %v211, 0.0
    %v386 = vadd.f32 %v384, %v385
    %v387 = vrot.slane %v386, 4
    %v388 = vadd.f32 %v386, %v387
    %v389 = vrot.slane %v388, 2
    %v390 = vadd.f32 %v388, %v389
    %v391 = vrot.slane %v390, 1
    %v392 = vadd.f32 %v390, %v391
    %v393 = vadd.f32 %v355, %v392
    %vm394 = vcmask 24576
    %395 = vst.msk [vmem:[#allocation2] sm:$0x1] %vm394, %v393
    %v396 = vld [vmem:[#allocation4] sm:$0x1]
    %v397 = vmul.f32 %v152, %v152
    %v398 = vmul.f32 %v155, %v155
    %v399 = vmul.f32 %v160, %v160
    %v400 = vmul.f32 %v163, %v163
    %v401 = vmul.f32 %v168, %v168
    %v402 = vmul.f32 %v171, %v171
    %v403 = vmul.f32 %v176, %v176
    %v404 = vmul.f32 %v179, %v179
    %v405 = vmul.f32 %v184, %v184
    %v406 = vmul.f32 %v187, %v187
    %v407 = vmul.f32 %v192, %v192
    %v408 = vmul.f32 %v195, %v195
    %v409 = vmul.f32 %v200, %v200
    %v410 = vmul.f32 %v203, %v203
    %v411 = vmul.f32 %v208, %v208
    %v412 = vmul.f32 %v211, %v211
    %v413 = vsel %vm88, %v397, 0.0
    %v414 = vsel %vm88, %v398, 0.0
    %v415 = vadd.f32 %v413, %v414
    %v416 = vsel %vm88, %v399, 0.0
    %v417 = vadd.f32 %v415, %v416
    %v418 = vsel %vm88, %v400, 0.0
    %v419 = vadd.f32 %v417, %v418
    %v420 = vsel %vm88, %v401, 0.0
    %v421 = vadd.f32 %v419, %v420
    %v422 = vsel %vm88, %v402, 0.0
    %v423 = vadd.f32 %v421, %v422
    %v424 = vsel %vm88, %v403, 0.0
    %v425 = vadd.f32 %v423, %v424
    %v426 = vsel %vm88, %v404, 0.0
    %v427 = vadd.f32 %v425, %v426
    %v428 = vsel %vm88, %v405, 0.0
    %v429 = vadd.f32 %v427, %v428
    %v430 = vsel %vm88, %v406, 0.0
    %v431 = vadd.f32 %v429, %v430
    %v432 = vsel %vm88, %v407, 0.0
    %v433 = vadd.f32 %v431, %v432
    %v434 = vsel %vm88, %v408, 0.0
    %v435 = vadd.f32 %v433, %v434
    %v436 = vsel %vm88, %v409, 0.0
    %v437 = vadd.f32 %v435, %v436
    %v438 = vsel %vm88, %v410, 0.0
    %v439 = vadd.f32 %v437, %v438
    %v440 = vsel %vm88, %v411, 0.0
    %v441 = vadd.f32 %v439, %v440
    %v442 = vsel %vm88, %v412, 0.0
    %v443 = vadd.f32 %v441, %v442
    %v444 = vrot.slane %v443, 4
    %v445 = vadd.f32 %v443, %v444
    %v446 = vrot.slane %v445, 2
    %v447 = vadd.f32 %v445, %v446
    %v448 = vrot.slane %v447, 1
    %v449 = vadd.f32 %v447, %v448
    %v450 = vadd.f32 %v396, %v449
    %451 = vst.msk [vmem:[#allocation4] sm:$0x1] %vm394, %v450
    // Predicated region
    $region22: #{tpu_custom_call.1} parent=1 // pred_check
      _
    $region23: #{tpu_custom_call.1} parent=1 // pred_check_branch
      %453 = sbr.rel (0) target = $region25
    $region24: #{tpu_custom_call.1} parent=1 // pred_region
      _
    $region25: #{tpu_custom_call.1} parent=1 // pred_fallthru
      _
    // Predicated region
    $region26: #{tpu_custom_call.1} parent=1 // pred_check
      _
    $region27: #{tpu_custom_call.1} parent=1 // pred_check_branch
      %455 = sbr.rel (0) target = $region29
    $region28: #{tpu_custom_call.1} parent=1 // pred_region
      _
    $region29: #{tpu_custom_call.1} parent=1 // pred_fallthru
      _
    // Predicated region
    $region30: #{tpu_custom_call.1} parent=1 // pred_check
      _
    $region31: #{tpu_custom_call.1} parent=1 // pred_check_branch
      %457 = sbr.rel (0) target = $region33
    $region32: #{tpu_custom_call.1} parent=1 // pred_region
      %s459 = ssub.s32 16, 16
      %460 = vsyncadd [#allocation3], %s459
      %s462 = sshll.u32 [#allocation2], 4
      %s463 = int_to_ptr.vmem [resolvable:$true] %s462
      %465 = dma.vmem_to_hbm [thread:$0]  %s463, 16, %s6, [#allocation3]
    $region33: #{tpu_custom_call.1} parent=1 // pred_fallthru
      _
    // Predicated region
    $region34: #{tpu_custom_call.1} parent=1 // pred_check
      _
    $region35: #{tpu_custom_call.1} parent=1 // pred_check_branch
      %467 = sbr.rel (0) target = $region37
    $region36: #{tpu_custom_call.1} parent=1 // pred_region
      %s469 = ssub.s32 16, 16
      %470 = vsyncadd [#allocation5], %s469
      %s472 = sshll.u32 [#allocation4], 4
      %s473 = int_to_ptr.vmem [resolvable:$true] %s472
      %475 = dma.vmem_to_hbm [thread:$0]  %s473, 16, %s7, [#allocation5]
    $region37: #{tpu_custom_call.1} parent=1 // pred_fallthru
      _
    // Predicated region
    $region38: #{tpu_custom_call.1} parent=1 // pred_check
      _
    $region39: #{tpu_custom_call.1} parent=1 // pred_check_branch
      %477 = sbr.rel (0) target = $region41
    $region40: #{tpu_custom_call.1} parent=1 // pred_region
      _
    $region41: #{tpu_custom_call.1} parent=1 // pred_fallthru
      _
    // Predicated region
    $region42: #{tpu_custom_call.1} parent=1 // pred_check
      _
    $region43: #{tpu_custom_call.1} parent=1 // pred_check_branch
      %479 = sbr.rel (0) target = $region45
    $region44: #{tpu_custom_call.1} parent=1 // pred_region
      _
    $region45: #{tpu_custom_call.1} parent=1 // pred_fallthru
      _
    // Predicated region
    $region46: #{tpu_custom_call.1} parent=1 // pred_check
      _
    $region47: #{tpu_custom_call.1} parent=1 // pred_check_branch
      %481 = sbr.rel (0) target = $region49
    $region48: #{tpu_custom_call.1} parent=1 // pred_region
      %482 = dma.done [#allocation3], 16
    $region49: #{tpu_custom_call.1} parent=1 // pred_fallthru
      _
    // Predicated region
    $region50: #{tpu_custom_call.1} parent=1 // pred_check
      _
    $region51: #{tpu_custom_call.1} parent=1 // pred_check_branch
      %484 = sbr.rel (0) target = $region53
    $region52: #{tpu_custom_call.1} parent=1 // pred_region
      %485 = dma.done [#allocation5], 16
    $region53: #{tpu_custom_call.1} parent=1 // pred_fallthru
      _
    %486 = vsyncpa [#allocation3], 1
    %487 = vsyncpa [#allocation5], 1

</llo_original>
